<compile_context>
chip_gen: v6e
topology: v6e:2x2x1
jax: 0.10.0
libtpu: 0.0.40
codegen_flags: <defaults>
</compile_context>

<pallas_src>
import jax
import jax.numpy as jnp
from jax.experimental import pallas as pl
from jax.experimental.pallas import tpu as pltpu


_VMEM_LIMIT_BYTES = 32 * 1024 * 1024   # fits v5e/v6e (128 MiB) and v7x (64 MiB)


def _round_up(x, m):
    return ((x + m - 1) // m) * m


def _matmul_dtype():
    """bf16 MXU operands on v6e/v7x, f32 elsewhere (v5e has no bf16 VPU)."""
    try:
        kind = jax.devices()[0].device_kind.lower()
    except Exception:
        return jnp.float32
    if "v6" in kind or "v7" in kind:
        return jnp.bfloat16
    return jnp.float32


# ----------------------------------------------------------------------------
# Shared row-tiled matmul kernels: out = act(x @ w + b)
# ----------------------------------------------------------------------------
def _mm_bias_relu_kernel(x_ref, w_ref, b_ref, o_ref):
    acc = jnp.dot(x_ref[...], w_ref[...], preferred_element_type=jnp.float32)
    acc = acc + b_ref[...]
    o_ref[...] = jnp.maximum(acc, 0.0).astype(o_ref.dtype)


def _mm_bias_kernel(x_ref, w_ref, b_ref, o_ref):
    acc = jnp.dot(x_ref[...], w_ref[...], preferred_element_type=jnp.float32)
    o_ref[...] = (acc + b_ref[...]).astype(o_ref.dtype)


def _mm_bias_logsoftmax_kernel(x_ref, w_ref, b_ref, o_ref):
    logits = jnp.dot(x_ref[...], w_ref[...],
                     preferred_element_type=jnp.float32) + b_ref[...]
    m = jnp.max(logits, axis=-1, keepdims=True)
    s = logits - m
    lse = jnp.log(jnp.sum(jnp.exp(s), axis=-1, keepdims=True))
    o_ref[...] = (s - lse).astype(o_ref.dtype)


def _tiled_rowmm(kernel_fn, x, w, b, *, tile_m=512, mm_dtype=jnp.float32):
    """x: [rows, Kd]; w: [Kd, N]; b: [1, N] (f32) -> f32 [rows, N]."""
    rows, kd = x.shape
    n = w.shape[1]
    tm = min(tile_m, _round_up(rows, 16))
    rows_p = _round_up(rows, tm)
    x = x.astype(mm_dtype)
    if rows_p != rows:
        x = jnp.pad(x, ((0, rows_p - rows), (0, 0)))
    out = pl.pallas_call(
        kernel_fn,
        out_shape=jax.ShapeDtypeStruct((rows_p, n), jnp.float32),
        grid_spec=pltpu.PrefetchScalarGridSpec(
            num_scalar_prefetch=0,
            grid=(rows_p // tm,),
            in_specs=[
                pl.BlockSpec((tm, kd), lambda i: (i, 0)),
                pl.BlockSpec((kd, n), lambda i: (0, 0)),
                pl.BlockSpec((1, n), lambda i: (0, 0)),
            ],
            out_specs=pl.BlockSpec((tm, n), lambda i: (i, 0)),
        ),
        compiler_params=pltpu.CompilerParams(
            dimension_semantics=("parallel",),
            vmem_limit_bytes=_VMEM_LIMIT_BYTES),
    )(x, w.astype(mm_dtype), b.astype(jnp.float32))
    return out[:rows] if rows_p != rows else out


# ----------------------------------------------------------------------------
# Causal dilated Conv1d + ReLU, channels-last
# ----------------------------------------------------------------------------
def causal_conv1d_relu(x_btc, w2, b, kernel_size, dilation, mm_dtype):
    """x_btc: [B, T, Cin]; w2: [K*Cin, Cout]; b: [1, Cout] -> [B, T, Cout]."""
    B, T, Cin = x_btc.shape
    Cout = w2.shape[1]
    pad = (kernel_size - 1) * dilation
    xp = jnp.pad(x_btc, ((0, 0), (pad, 0), (0, 0)))            # causal left pad
    # tap k reads x[t - (K-1-k)*d]; taps concatenated along the lane axis
    # (no relayout transposes).
    taps = [xp[:, k * dilation:k * dilation + T, :] for k in range(kernel_size)]
    patches = jnp.concatenate(taps, axis=-1).reshape(B * T, Cin * kernel_size)
    out = _tiled_rowmm(_mm_bias_relu_kernel, patches, w2, b, mm_dtype=mm_dtype)
    return out.reshape(B, T, Cout)


# ----------------------------------------------------------------------------
# LSTM: hoisted input projection + chunked recurrence
# ----------------------------------------------------------------------------
def _lstm_chunk_kernel(gx_ref, whh_ref, o_ref, h_sc, c_sc):
    @pl.when(pl.program_id(0) == 0)
    def _():
        h_sc[...] = jnp.zeros_like(h_sc)
        c_sc[...] = jnp.zeros_like(c_sc)

    H = h_sc.shape[-1]
    chunk = gx_ref.shape[0]
    whh = whh_ref[...]
    wdtype = whh.dtype

    def step(s, carry):
        h, c = carry
        gates = gx_ref[s] + jnp.dot(h.astype(wdtype), whh,
                                    preferred_element_type=jnp.float32)
        sig = jax.nn.sigmoid(gates)            # whole-vreg EUP activations,
        tnh = jnp.tanh(gates)                  # slice afterwards
        i = sig[:, 0 * H:1 * H]
        f = sig[:, 1 * H:2 * H]
        g = tnh[:, 2 * H:3 * H]
        o = sig[:, 3 * H:4 * H]
        c_new = f * c + i * g
        h_new = o * jnp.tanh(c_new)
        o_ref[s] = h_new.astype(o_ref.dtype)
        return h_new, c_new

    h_f, c_f = jax.lax.fori_loop(0, chunk, step, (h_sc[...], c_sc[...]),
                                 unroll=True)
    h_sc[...] = h_f
    c_sc[...] = c_f


def _pick_chunk(T, max_chunk=32):
    for c in range(min(T, max_chunk), 0, -1):
        if T % c == 0:
            return c
    return 1


def lstm_forward(x_btd, w_ih, w_hh, bias, mm_dtype):
    """x_btd: [B, T, D]; w_ih: [D, 4H]; w_hh: [H, 4H]; bias: [1, 4H].

    Returns time-major hidden states [T, B, H] (f32).
    """
    B, T, D = x_btd.shape
    H = w_hh.shape[0]
    # Hoist the input projection out of the serial loop: one big tiled matmul.
    x_tbd = jnp.transpose(x_btd, (1, 0, 2))                     # [T, B, D]
    gx = _tiled_rowmm(_mm_bias_kernel, x_tbd.reshape(T * B, D), w_ih, bias,
                      mm_dtype=mm_dtype)
    gx = gx.reshape(T, B, 4 * H)

    chunk = _pick_chunk(T)
    h_out = pl.pallas_call(
        _lstm_chunk_kernel,
        out_shape=jax.ShapeDtypeStruct((T, B, H), jnp.float32),
        grid_spec=pltpu.PrefetchScalarGridSpec(
            num_scalar_prefetch=0,
            grid=(T // chunk,),
            in_specs=[
                pl.BlockSpec((chunk, B, 4 * H), lambda t: (t, 0, 0)),
                pl.BlockSpec((H, 4 * H), lambda t: (0, 0)),
            ],
            out_specs=pl.BlockSpec((chunk, B, H), lambda t: (t, 0, 0)),
            scratch_shapes=[pltpu.VMEM((B, H), jnp.float32),
                            pltpu.VMEM((B, H), jnp.float32)],
        ),
        compiler_params=pltpu.CompilerParams(
            dimension_semantics=("arbitrary",),
            vmem_limit_bytes=_VMEM_LIMIT_BYTES),
    )(gx, w_hh.astype(mm_dtype))
    return h_out


# ----------------------------------------------------------------------------
# Decoder: linear + log_softmax with classes padded to 128 lanes
# ----------------------------------------------------------------------------
def decoder_forward(x_rows, w_pad, b_pad, n_classes, mm_dtype):
    """x_rows: [rows, H]; w_pad: [H, Cpad]; b_pad: [1, Cpad] -> [rows, C]."""
    out = _tiled_rowmm(_mm_bias_logsoftmax_kernel, x_rows, w_pad, b_pad,
                       mm_dtype=mm_dtype)
    return out[:, :n_classes]


# ----------------------------------------------------------------------------
# Network wrapper (parameter setup is plain JAX glue)
# ----------------------------------------------------------------------------
class Network:
    def __init__(self, TCN_parameters, LSTM_parameters, decoder_parameters, key):
        self.mm_dtype = _matmul_dtype()

        keys = jax.random.split(key, 16)
        k_it = iter(keys)

        # ---- TCN: stack of causal dilated conv layers (channels-last) ----
        cin = TCN_parameters["in_channels"]
        cout = TCN_parameters["out_channels"]
        ksz = TCN_parameters["kernel_size"]
        nlayers = TCN_parameters["num_layers"]
        self.tcn_w2, self.tcn_b, self.tcn_k, self.tcn_dil = [], [], [], []
        c_prev = cin
        for layer in range(nlayers):
            w = 0.1 * jax.random.normal(next(k_it), (cout, c_prev, ksz), jnp.float32)
            b = 0.1 * jax.random.normal(next(k_it), (cout,), jnp.float32)
            # pre-reshape [Cout, Cin, K] -> [K*Cin, Cout] matching tap-concat layout
            w2 = jnp.transpose(w, (2, 1, 0)).reshape(ksz * c_prev, cout)
            self.tcn_w2.append(w2.astype(self.mm_dtype))
            self.tcn_b.append(b.reshape(1, cout).astype(jnp.float32))
            self.tcn_k.append(ksz)
            self.tcn_dil.append(2 ** layer)
            c_prev = cout

        # ---- LSTM (single layer, unidirectional) ----
        D = LSTM_parameters["input_size"]
        H = LSTM_parameters["hidden_size"]
        self.H = H
        self.w_ih = (0.1 * jax.random.normal(next(k_it), (D, 4 * H),
                                             jnp.float32)).astype(self.mm_dtype)
        self.w_hh = (0.1 * jax.random.normal(next(k_it), (H, 4 * H),
                                             jnp.float32)).astype(self.mm_dtype)
        # TODO(synk): PyTorch nn.LSTM has separate b_ih/b_hh; fused into one bias.
        self.lstm_b = (0.1 * jax.random.normal(next(k_it), (1, 4 * H),
                                               jnp.float32)).astype(jnp.float32)

        # ---- Decoder (classes padded to 128 lanes; padded logits masked) ----
        C = decoder_parameters["output_size"]
        self.n_classes = C
        Cpad = max(128, _round_up(C, 128))
        wd = 0.1 * jax.random.normal(next(k_it), (H, C), jnp.float32)
        bd = 0.1 * jax.random.normal(next(k_it), (C,), jnp.float32)
        self.dec_w = jnp.pad(wd, ((0, 0), (0, Cpad - C))).astype(self.mm_dtype)
        self.dec_b = jnp.concatenate(
            [bd, jnp.full((Cpad - C,), -1e30, jnp.float32)]).reshape(1, Cpad)

    def __call__(self, input_sequence):
        """input_sequence: [batch, input_dimensionality, sequence_length]."""
        B, _, T = input_sequence.shape
        x = jnp.transpose(input_sequence, (0, 2, 1))             # -> [B, T, Cin] once
        for w2, b, k, d in zip(self.tcn_w2, self.tcn_b, self.tcn_k, self.tcn_dil):
            x = causal_conv1d_relu(x, w2, b, k, d, self.mm_dtype)   # [B, T, Cout]
        h_tbh = lstm_forward(x, self.w_ih, self.w_hh, self.lstm_b,
                             self.mm_dtype)                         # [T, B, H]
        logp = decoder_forward(h_tbh.reshape(T * B, self.H), self.dec_w,
                               self.dec_b, self.n_classes, self.mm_dtype)
        return jnp.transpose(logp.reshape(T, B, self.n_classes), (1, 0, 2))


if __name__ == "__main__":
    key = jax.random.PRNGKey(0)
    k_param, k_data = jax.random.split(key)

    TCN_parameters = dict(in_channels=1, out_channels=32, kernel_size=3, num_layers=2)
    LSTM_parameters = dict(input_size=32, hidden_size=32)
    decoder_parameters = dict(input_size=32, output_size=5)

    net = Network(TCN_parameters, LSTM_parameters, decoder_parameters, k_param)

    B, C_in, T = 2, 1, 16
    x = jax.random.normal(k_data, (B, C_in, T), jnp.float32)

    out = net(x)
    jax.block_until_ready(out)
    assert out.shape == (B, T, decoder_parameters["output_size"])
    assert bool(jnp.all(jnp.isfinite(out)))
    print("KERNEL_OK")
</pallas_src>

<mosaic_0001>
module attributes {stable_mosaic.version = 11 : i64} {
  func.func @_mm_bias_relu_kernel(%arg0: i32, %arg1: memref<32x3xf32, #tpu.memory_space<vmem>>, %arg2: memref<3x32xf32, #tpu.memory_space<vmem>>, %arg3: memref<1x32xf32, #tpu.memory_space<vmem>>, %arg4: memref<32x32xf32, #tpu.memory_space<vmem>>) attributes {dimension_semantics = [#tpu.dimension_semantics<parallel>], iteration_bounds = array<i64: 1>, scalar_prefetch = 0 : i64, scratch_operands = 0 : i64, tpu.core_type = #tpu.core_type<tc>, window_params = [{transform_indices = @transform_0, window_bounds = array<i64: 32, 3>}, {pipeline_mode = #tpu.pipeline_mode<synchronous>, transform_indices = @transform_1, window_bounds = array<i64: 3, 32>}, {pipeline_mode = #tpu.pipeline_mode<synchronous>, transform_indices = @transform_2, window_bounds = array<i64: 1, 32>}, {transform_indices = @transform_3, window_bounds = array<i64: 32, 32>}]} {
    %c0 = arith.constant 0 : index
    %c0_0 = arith.constant 0 : index
    %0 = vector.load %arg1[%c0, %c0_0] : memref<32x3xf32, #tpu.memory_space<vmem>>, vector<32x3xf32>
    %c0_1 = arith.constant 0 : index
    %c0_2 = arith.constant 0 : index
    %1 = vector.load %arg2[%c0_1, %c0_2] : memref<3x32xf32, #tpu.memory_space<vmem>>, vector<3x32xf32>
    %cst = arith.constant dense<0.000000e+00> : vector<32x32xf32>
    %2 = tpu.matmul %0, %1, %cst {dimension_numbers = #tpu.dot_dimension_numbers<[1], [0], [0], [1], [0, 0, 1, 1], [], []>} : vector<32x3xf32>, vector<3x32xf32>, vector<32x32xf32> -> vector<32x32xf32>
    %c0_3 = arith.constant 0 : index
    %c0_4 = arith.constant 0 : index
    %3 = vector.load %arg3[%c0_3, %c0_4] : memref<1x32xf32, #tpu.memory_space<vmem>>, vector<1x32xf32>
    %4 = vector.broadcast %3 : vector<1x32xf32> to vector<32x32xf32>
    %5 = arith.addf %2, %4 : vector<32x32xf32>
    %cst_5 = arith.constant 0.000000e+00 : f32
    %6 = vector.broadcast %cst_5 : f32 to vector<32x32xf32>
    %7 = arith.maximumf %5, %6 : vector<32x32xf32>
    %c0_6 = arith.constant 0 : index
    %c0_7 = arith.constant 0 : index
    %8 = vector.load %arg4[%c0_6, %c0_7] : memref<32x32xf32, #tpu.memory_space<vmem>>, vector<32x32xf32>
    tpu.vector_store %arg4[%c0_6, %c0_7], %7 {strides = array<i32>} : memref<32x32xf32, #tpu.memory_space<vmem>>, vector<32x32xf32>,
    return
  }
  func.func @transform_0(%arg0: i32) -> (i32, i32) {
    %c0_i32 = arith.constant 0 : i32
    %c0_i32_0 = arith.constant 0 : i32
    return %arg0, %c0_i32 : i32, i32
  }
  func.func @transform_1(%arg0: i32) -> (i32, i32) {
    %c0_i32 = arith.constant 0 : i32
    %c0_i32_0 = arith.constant 0 : i32
    %c0_i32_1 = arith.constant 0 : i32
    return %c0_i32, %c0_i32_0 : i32, i32
  }
  func.func @transform_2(%arg0: i32) -> (i32, i32) {
    %c0_i32 = arith.constant 0 : i32
    %c0_i32_0 = arith.constant 0 : i32
    %c0_i32_1 = arith.constant 0 : i32
    return %c0_i32, %c0_i32_0 : i32, i32
  }
  func.func @transform_3(%arg0: i32) -> (i32, i32) {
    %c0_i32 = arith.constant 0 : i32
    %c0_i32_0 = arith.constant 0 : i32
    return %arg0, %c0_i32 : i32, i32
  }
}

</mosaic_0001>

<llo_original>
// kernel: tpu_custom_call.1
$region0: #{tpu_custom_call.1}
  #allocation0 [shape = 'u32[]', space=smem, size = 0x4, offset = 0x4, fixed_abs, tag = 'smem constant byte address 0x4 - core index']
  #allocation1 [shape = 'u32[144,128]{1,0:T(1,128)}', space=vmem, size = 0x12000, scoped, tag = 'internal scratch']
  %s0 = inlined_call_operand.vmem [shape: f32[32,3], index: 0, kind: input, shape index: {}]
  %s1 = inlined_call_operand.vmem [shape: f32[3,32], index: 1, kind: input, shape index: {}]
  %s2 = inlined_call_operand.vmem [shape: f32[1,32], index: 2, kind: input, shape index: {}]
  %s3 = inlined_call_operand.hbm [shape: f32[32,32], index: 3, kind: output, shape index: {}]
  %s4 = sld [smem:[#allocation0]]
  $region22: #{tpu_custom_call.1} parent=0
    _
  %s6 = ssub.s32 1, %s4
  %s7 = scalar_select 0, %s6, %s4
  $region1: #{tpu_custom_call.1} parent=0
    #allocation2 [shape = 'u8[16384]{0}', space=vmem, size = 0x4000, scoped, tag = 'output window, operand 0, single buffered']
    #allocation3 [shape = 's32[1]{0}', space=sflag, size = 0x4, scoped, tag = 'scoped memory for tpu_custom_call.1']
    %8 = vsyncpa [#allocation3], 0
    // Predicated region
    $region2: #{tpu_custom_call.1} parent=1 // pred_check
      _
    $region3: #{tpu_custom_call.1} parent=1 // pred_check_branch
      %10 = sbr.rel (0) target = $region5
    $region4: #{tpu_custom_call.1} parent=1 // pred_region
      _
    $region5: #{tpu_custom_call.1} parent=1 // pred_fallthru
      _
    // Predicated region
    $region6: #{tpu_custom_call.1} parent=1 // pred_check
      _
    $region7: #{tpu_custom_call.1} parent=1 // pred_check_branch
      %12 = sbr.rel (0) target = $region9
    $region8: #{tpu_custom_call.1} parent=1 // pred_region
      _
    $region9: #{tpu_custom_call.1} parent=1 // pred_fallthru
      _
    // Predicated region
    $region10: #{tpu_custom_call.1} parent=1 // pred_check
      _
    $region11: #{tpu_custom_call.1} parent=1 // pred_check_branch
      %14 = sbr.rel (0) target = $region13
    $region12: #{tpu_custom_call.1} parent=1 // pred_region
      _
    $region13: #{tpu_custom_call.1} parent=1 // pred_fallthru
      _
    %v15 = vld [vmem:[%s0] sm:$0xff]
    %v16 = vld [vmem:[%s0 + $0x8] sm:$0xff]
    %v17 = vld [vmem:[%s0 + $0x10] sm:$0xff]
    %v18 = vld [vmem:[%s0 + $0x18] sm:$0xff]
    %v19 = vld [vmem:[%s1] sm:$0x7]
    %v20 = vld [vmem:[%s2] sm:$0x1]
    %v22 = vlaneseq
    %v23 = vshrl.u32 %v22, 7
    %v24 = vsub.s32 0, %v23
    %v25 = vrot.slane %v20, %v24
    %vm27 = vcmask 23552
    %v29 = vsel %vm27, %v15, 0
    %v32 = vsel %vm27, %v16, 0
    %v35 = vsel %vm27, %v17, 0
    %v38 = vsel %vm27, %v18, 0
    %vm40 = vcmask 1042432
    %v42 = vsel %vm40, %v19, 0
    %44 = vmatprep.subr.mxu0 0.0
    %45 = vmatpush1.msra.mxu0 0.0
    %46 = vmatprep.subr.mxu0 0.0
    %47 = vmatpush1.msra.mxu0 0.0
    %48 = vmatprep.subr.mxu0 0.0
    %49 = vmatpush1.msra.mxu0 0.0
    %50 = vmatprep.subr.mxu0 0.0
    %51 = vmatpush1.msra.mxu0 0.0
    %52 = vmatprep.subr.mxu0 0.0
    %53 = vmatpush1.msra.mxu0 0.0
    %54 = vmatprep.subr.mxu0 0.0
    %55 = vmatpush1.msra.mxu0 0.0
    %56 = vmatprep.subr.mxu0 0.0
    %57 = vmatpush1.msra.mxu0 0.0
    %58 = vmatprep.subr.mxu0 0.0
    %59 = vmatpush1.msra.mxu0 0.0
    %60 = vmatprep.subr.mxu0 0.0
    %61 = vmatpush1.msra.mxu0 0.0
    %62 = vmatprep.subr.mxu0 0.0
    %63 = vmatpush1.msra.mxu0 0.0
    %64 = vmatprep.subr.mxu0 0.0
    %65 = vmatpush1.msra.mxu0 0.0
    %66 = vmatprep.subr.mxu0 0.0
    %67 = vmatpush1.msra.mxu0 0.0
    %68 = vmatprep.subr.mxu0 0.0
    %69 = vmatpush1.msra.mxu0 0.0
    %70 = vmatprep.subr.mxu0 0.0
    %71 = vmatpush1.msra.mxu0 0.0
    %72 = vmatprep.subr.mxu0 0.0
    %73 = vmatpush1.msra.mxu0 0.0
    %74 = vmatprep.subr.mxu0 0.0
    %75 = vmatpush1.msra.mxu0 %v42
    %76 = vmatprep.subr.mxu0 0.0
    %77 = vmatpush2.msra.mxu0 0.0
    %78 = vmatprep.subr.mxu0 0.0
    %79 = vmatpush2.msra.mxu0 0.0
    %80 = vmatprep.subr.mxu0 0.0
    %81 = vmatpush2.msra.mxu0 0.0
    %82 = vmatprep.subr.mxu0 0.0
    %83 = vmatpush2.msra.mxu0 0.0
    %84 = vmatprep.subr.mxu0 0.0
    %85 = vmatpush2.msra.mxu0 0.0
    %86 = vmatprep.subr.mxu0 0.0
    %87 = vmatpush2.msra.mxu0 0.0
    %88 = vmatprep.subr.mxu0 0.0
    %89 = vmatpush2.msra.mxu0 0.0
    %90 = vmatprep.subr.mxu0 0.0
    %91 = vmatpush2.msra.mxu0 0.0
    %92 = vmatprep.subr.mxu0 0.0
    %93 = vmatpush2.msra.mxu0 0.0
    %94 = vmatprep.subr.mxu0 0.0
    %95 = vmatpush2.msra.mxu0 0.0
    %96 = vmatprep.subr.mxu0 0.0
    %97 = vmatpush2.msra.mxu0 0.0
    %98 = vmatprep.subr.mxu0 0.0
    %99 = vmatpush2.msra.mxu0 0.0
    %100 = vmatprep.subr.mxu0 0.0
    %101 = vmatpush2.msra.mxu0 0.0
    %102 = vmatprep.subr.mxu0 0.0
    %103 = vmatpush2.msra.mxu0 0.0
    %104 = vmatprep.subr.mxu0 0.0
    %105 = vmatpush2.msra.mxu0 0.0
    %106 = vmatprep.subr.mxu0 0.0
    %107 = vmatpush2.msra.mxu0 0.0
    %108 = vmatprep.mubr.f32.mxu0 0.0
    %109 = vmatmul.mubr.f32.gmra.mxu0 %v29
    %v110 = vpop.f32.mrf.mxu0
    %v111 = vadd.f32 %v25, %v110
    %v112 = vpop.f32.mrf.mxu0
    %113 = vmatprep.mubr.f32.mxu0 0.0
    %114 = vmatmul.mubr.f32.gmra.mxu0 %v32
    %v115 = vpop.f32.mrf.mxu0
    %v116 = vadd.f32 %v25, %v115
    %v117 = vpop.f32.mrf.mxu0
    %118 = vmatprep.mubr.f32.mxu0 0.0
    %119 = vmatmul.mubr.f32.gmra.mxu0 %v35
    %v120 = vpop.f32.mrf.mxu0
    %v121 = vadd.f32 %v25, %v120
    %v122 = vpop.f32.mrf.mxu0
    %123 = vmatprep.mubr.f32.mxu0 0.0
    %124 = vmatmul.mubr.f32.gmra.mxu0 %v38
    %v125 = vpop.f32.mrf.mxu0
    %v126 = vadd.f32 %v25, %v125
    %v127 = vpop.f32.mrf.mxu0
    %128 = vdwg.mxu0
    %v129 = vmax.f32 %v111, 0.0
    %v130 = vmax.f32 %v116, 0.0
    %v131 = vmax.f32 %v121, 0.0
    %v132 = vmax.f32 %v126, 0.0
    %vm133 = vcmask 261120
    %134 = vst.msk [vmem:[#allocation2] sm:$0xff] %vm133, %v129
    %135 = vst.msk [vmem:[#allocation2 + $0x8] sm:$0xff] %vm133, %v130
    %136 = vst.msk [vmem:[#allocation2 + $0x10] sm:$0xff] %vm133, %v131
    %137 = vst.msk [vmem:[#allocation2 + $0x18] sm:$0xff] %vm133, %v132
    // Predicated region
    $region14: #{tpu_custom_call.1} parent=1 // pred_check
      _
    $region15: #{tpu_custom_call.1} parent=1 // pred_check_branch
      %139 = sbr.rel (0) target = $region17
    $region16: #{tpu_custom_call.1} parent=1 // pred_region
      %s141 = ssub.s32 512, 512
      %142 = vsyncadd [#allocation3], %s141
      %s143 = sshll.u32 [#allocation2], 4
      %s144 = int_to_ptr.vmem [resolvable:$true] %s143
      %149 = dma.vmem_to_hbm [thread:$0]  %s144, 512, %s3, [#allocation3], 128, 128, 8
    $region17: #{tpu_custom_call.1} parent=1 // pred_fallthru
      _
    // Predicated region
    $region18: #{tpu_custom_call.1} parent=1 // pred_check
      _
    $region19: #{tpu_custom_call.1} parent=1 // pred_check_branch
      %151 = sbr.rel (0) target = $region21
    $region20: #{tpu_custom_call.1} parent=1 // pred_region
      %152 = dma.done [#allocation3], 512
    $region21: #{tpu_custom_call.1} parent=1 // pred_fallthru
      _
    %153 = vsyncpa [#allocation3], 1

</llo_original>
